<compile_context>
chip_gen: v7x
topology: tpu7x:2x2x1
jax: 0.10.0
libtpu: 0.0.40
codegen_flags: <defaults>
</compile_context>

<pallas_src>
import functools
import math

import jax
import jax.numpy as jnp
from jax import lax
from jax.experimental import pallas as pl
from jax.experimental.pallas import tpu as pltpu

TWO_PI = 2.0 * math.pi


def _steppy(x):
    return x - jnp.sin(TWO_PI * x) / TWO_PI


def _round_up(v, m):
    return (v + m - 1) // m * m


def _cvae_kernel(xye_ref, ew1_ref, wmv_ref, dwz_ref, dwy_ref, dw2_ref,
                 wrd_ref, b_ref, out_ref, *, n_states, cond, h1, latent):
    f32 = jnp.float32

    # Packed biases: [eb1 | bmu|bvar | db1 | db2 | br|bd]; static lane slices.
    b_all = b_ref[...]
    o = 0
    eb1 = b_all[:, o:o + h1]; o += h1
    bmv = b_all[:, o:o + 2 * latent]; o += 2 * latent
    db1 = b_all[:, o:o + h1]; o += h1
    db2 = b_all[:, o:o + n_states]; o += n_states
    brd = b_all[:, o:o + 2]

    # Packed input slab: [x | y | eps]  (TB, n_states + cond + latent)
    slab = xye_ref[...]
    y = slab[:, n_states:n_states + cond]
    eps = slab[:, n_states + cond:]

    # ---------------- Encoder ----------------
    # ew1 is zero-padded over the eps lanes, so the whole slab feeds one matmul:
    # slab @ ew1_pad == x @ W1x + y @ W1y.
    hidden = jnp.dot(slab, ew1_ref[...], preferred_element_type=f32) + eb1
    hidden = jnp.maximum(hidden, 0.0)

    # Fused mu/var head: one matmul, columns = [z_mu | z_var].
    mv = jnp.dot(hidden, wmv_ref[...], preferred_element_type=f32) + bmv
    z_mu = mv[:, :latent]
    z_var = mv[:, latent:]

    # ---------------- Reparameterization ----------------
    std = jnp.exp(0.5 * z_var)
    x_sample = eps * std + z_mu

    # ---------------- Decoder ----------------
    # z = cat(x_sample, y); z @ W == x_sample @ W[:L] + y @ W[L:]
    h = (jnp.dot(x_sample, dwz_ref[...], preferred_element_type=f32)
         + jnp.dot(y, dwy_ref[...], preferred_element_type=f32)
         + db1)
    h = jnp.maximum(h, 0.0)

    state_prime = jnp.dot(h, dw2_ref[...], preferred_element_type=f32) + db2
    state_prime = jnp.maximum(state_prime, 0.0)
    state_prime = _steppy(_steppy(state_prime))

    # Fused reward/done head: one matmul, columns = [reward | done].
    rd = jnp.dot(state_prime, wrd_ref[...], preferred_element_type=f32) + brd
    # reward head: reward_layer is False (PyTorch typo) -> no relu
    # done head:   done_layer is True                  -> relu (column 1 only)
    col = lax.broadcasted_iota(jnp.int32, rd.shape, 1)
    rd = jnp.where(col == 1, jnp.maximum(rd, 0.0), rd)

    # Direct sub-slice stores into the narrow output: [gen | z_mu|z_var | r|d]
    out_ref[:, :n_states] = state_prime
    out_ref[:, n_states:n_states + 2 * latent] = mv
    out_ref[:, n_states + 2 * latent:] = rd


def make_cvae_params(key, n_states, n_actions, h1, latent_dim):
    """Deterministic parameter init. Weights stored (in, out) = transposed nn.Linear."""
    cond_dim = n_states + n_actions
    enc_in = n_states + cond_dim
    out_dim = n_states

    def lin(k, fan_in, fan_out):
        kw, kb = jax.random.split(k)
        bound = 1.0 / math.sqrt(fan_in)
        w = jax.random.uniform(kw, (fan_in, fan_out), jnp.float32, -bound, bound)
        b = jax.random.uniform(kb, (1, fan_out), jnp.float32, -bound, bound)
        return w, b

    ks = jax.random.split(key, 7)
    ew1, eb1 = lin(ks[0], enc_in, h1)
    wmu, bmu = lin(ks[1], h1, latent_dim)
    wvar, bvar = lin(ks[2], h1, latent_dim)
    # decoder.latent_to_hidden has fan_in = latent + cond; split into z/y parts.
    dw_full, db1 = lin(ks[3], latent_dim + cond_dim, h1)
    dw2, db2 = lin(ks[4], h1, out_dim)
    wr, br = lin(ks[5], out_dim, 1)
    wd, bd = lin(ks[6], out_dim, 1)
    return dict(
        ew1x=ew1[:n_states], ew1y=ew1[n_states:], eb1=eb1,
        wmu=wmu, bmu=bmu, wvar=wvar, bvar=bvar,
        dwz=dw_full[:latent_dim], dwy=dw_full[latent_dim:], db1=db1,
        dw2=dw2, db2=db2, wr=wr, br=br, wd=wd, bd=bd)


def cvae_forward(x, y, eps, params, *, block_b=None, max_block_b=2048,
                 interpret=False):
    """x: (B, N_STATES), y: (B, N_STATES + N_ACTIONS), eps: (B, latent)."""
    b = x.shape[0]
    n_states = x.shape[1]
    cond = y.shape[1]
    latent = eps.shape[1]
    h1 = params["eb1"].shape[1]

    # --- Host-side packing (tiny / one pass; upstream callers could keep the
    # xye slab packed to avoid even this concat) ---
    xye = jnp.concatenate([x, y, eps], axis=1)                  # (B, 38)
    slab_w = n_states + cond + latent
    # Encoder weight zero-padded over the eps lanes of the slab.
    ew1_pad = jnp.concatenate(
        [params["ew1x"], params["ew1y"], jnp.zeros((latent, h1), jnp.float32)],
        axis=0)                                                 # (38, h1)
    wmv = jnp.concatenate([params["wmu"], params["wvar"]], axis=1)   # (h1, 2L)
    wrd = jnp.concatenate([params["wr"], params["wd"]], axis=1)      # (ns, 2)
    b_all = jnp.concatenate(
        [params["eb1"], params["bmu"], params["bvar"],
         params["db1"], params["db2"], params["br"], params["bd"]], axis=1)

    used = n_states + 2 * latent + 2            # exact output width (no 128 pad)

    # --- Batch tiling: big tiles (amortize per-step overhead), but >=2 tiles
    # for B > 256 so both v7x TensorCores get work; tail block handled by
    # Pallas masking, no wrapper-side jnp.pad. ---
    if block_b is None:
        if b <= 256:
            block_b = _round_up(max(b, 1), 8)
        else:
            n_tiles = max(2, pl.cdiv(b, max_block_b))
            block_b = min(_round_up(pl.cdiv(b, n_tiles), 8), max_block_b)
    grid = (pl.cdiv(b, block_b),)

    # VMEM budget: double-buffered input + output slabs (lane-padded to 128)
    # plus a little for the resident weights; 1.5x headroom, capped at 48 MiB.
    per_row_bytes = (128 + 128) * 4
    vmem_need = 2 * block_b * per_row_bytes + (2 << 20)
    vmem_limit = min(48 * 1024 * 1024,
                     max(32 * 1024 * 1024, (vmem_need * 3) // 2))

    def row_spec(f):
        return pl.BlockSpec((block_b, f), lambda i: (i, 0))

    def full_spec(arr):
        # Weights/biases: same block every grid step -> stay VMEM-resident.
        return pl.BlockSpec(arr.shape, lambda i: (0, 0))

    kernel = functools.partial(_cvae_kernel, n_states=n_states, cond=cond,
                               h1=h1, latent=latent)

    out = pl.pallas_call(
        kernel,
        out_shape=jax.ShapeDtypeStruct((b, used), jnp.float32),
        grid=grid,
        in_specs=[
            row_spec(slab_w),
            full_spec(ew1_pad), full_spec(wmv),
            full_spec(params["dwz"]), full_spec(params["dwy"]),
            full_spec(params["dw2"]), full_spec(wrd), full_spec(b_all),
        ],
        out_specs=row_spec(used),
        compiler_params=pltpu.CompilerParams(
            dimension_semantics=("parallel",),
            vmem_limit_bytes=vmem_limit),
        interpret=interpret,
    )(xye, ew1_pad, wmv, params["dwz"], params["dwy"], params["dw2"],
      wrd, b_all)

    s0 = n_states
    gen = out[:, :s0]
    z_mu = out[:, s0:s0 + latent]
    z_var = out[:, s0 + latent:s0 + 2 * latent]
    rew = out[:, s0 + 2 * latent:s0 + 2 * latent + 1]
    done = out[:, s0 + 2 * latent + 1:s0 + 2 * latent + 2]
    return gen, rew, done, z_mu, z_var


def cvae_reference(x, y, eps, p):
    """Pure-JAX reference for correctness checking (full-precision matmuls)."""
    with jax.default_matmul_precision("highest"):
        hidden = jnp.maximum(x @ p["ew1x"] + y @ p["ew1y"] + p["eb1"], 0.0)
        z_mu = hidden @ p["wmu"] + p["bmu"]
        z_var = hidden @ p["wvar"] + p["bvar"]
        std = jnp.exp(z_var / 2.0)
        x_sample = eps * std + z_mu
        h = jnp.maximum(x_sample @ p["dwz"] + y @ p["dwy"] + p["db1"], 0.0)
        sp = jnp.maximum(h @ p["dw2"] + p["db2"], 0.0)
        sp = _steppy(_steppy(sp))
        rew = sp @ p["wr"] + p["br"]
        dn = jnp.maximum(sp @ p["wd"] + p["bd"], 0.0)
    return sp, rew, dn, z_mu, z_var


def _check(outs, refs, tag):
    for o, r in zip(outs, refs):
        assert o.shape == r.shape and o.dtype == r.dtype, tag
        assert jnp.allclose(o, r, atol=1e-4, rtol=1e-4), f"mismatch ({tag})"


if __name__ == "__main__":
    # Small shapes consistent with the module.
    N_STATES = 16
    N_ACTIONS = 4
    H1 = 32
    LATENT = 2
    COND = N_STATES + N_ACTIONS
    B_BIG = 300   # exercises the >=2-tile path + partial tail block

    key = jax.random.PRNGKey(0)
    kx, ky, keps, kp = jax.random.split(key, 4)
    x = jax.random.normal(kx, (B_BIG, N_STATES), jnp.float32)
    y = jax.random.normal(ky, (B_BIG, COND), jnp.float32)
    eps = jax.random.normal(keps, (B_BIG, LATENT), jnp.float32)  # randn_like(std)
    params = make_cvae_params(kp, N_STATES, N_ACTIONS, H1, LATENT)

    # Small batch (single tile).
    B = 8
    outs = jax.block_until_ready(cvae_forward(x[:B], y[:B], eps[:B], params))
    _check(outs, cvae_reference(x[:B], y[:B], eps[:B], params), "B=8")

    # Batch not a multiple of the sublane tile (partial-block masking).
    B2 = 6
    outs2 = jax.block_until_ready(cvae_forward(x[:B2], y[:B2], eps[:B2], params))
    _check(outs2, cvae_reference(x[:B2], y[:B2], eps[:B2], params), "B=6")

    # Larger batch: >=2 grid tiles (dual-TC sharding on v7x) + tail block.
    outs3 = jax.block_until_ready(cvae_forward(x, y, eps, params))
    _check(outs3, cvae_reference(x, y, eps, params), "B=300")

    print("KERNEL_OK")
</pallas_src>

<mosaic_0001>
module attributes {stable_mosaic.version = 11 : i64} {
  func.func @_cvae_kernel(%arg0: i32, %arg1: memref<8x38xf32, #tpu.memory_space<vmem>>, %arg2: memref<38x32xf32, #tpu.memory_space<vmem>>, %arg3: memref<32x4xf32, #tpu.memory_space<vmem>>, %arg4: memref<2x32xf32, #tpu.memory_space<vmem>>, %arg5: memref<20x32xf32, #tpu.memory_space<vmem>>, %arg6: memref<32x16xf32, #tpu.memory_space<vmem>>, %arg7: memref<16x2xf32, #tpu.memory_space<vmem>>, %arg8: memref<1x86xf32, #tpu.memory_space<vmem>>, %arg9: memref<8x22xf32, #tpu.memory_space<vmem>>) attributes {dimension_semantics = [#tpu.dimension_semantics<parallel>], iteration_bounds = array<i64: 1>, scalar_prefetch = 0 : i64, scratch_operands = 0 : i64, tpu.core_type = #tpu.core_type<tc>, window_params = [{transform_indices = @transform_0, window_bounds = array<i64: 8, 38>}, {pipeline_mode = #tpu.pipeline_mode<synchronous>, transform_indices = @transform_1, window_bounds = array<i64: 38, 32>}, {pipeline_mode = #tpu.pipeline_mode<synchronous>, transform_indices = @transform_2, window_bounds = array<i64: 32, 4>}, {pipeline_mode = #tpu.pipeline_mode<synchronous>, transform_indices = @transform_3, window_bounds = array<i64: 2, 32>}, {pipeline_mode = #tpu.pipeline_mode<synchronous>, transform_indices = @transform_4, window_bounds = array<i64: 20, 32>}, {pipeline_mode = #tpu.pipeline_mode<synchronous>, transform_indices = @transform_5, window_bounds = array<i64: 32, 16>}, {pipeline_mode = #tpu.pipeline_mode<synchronous>, transform_indices = @transform_6, window_bounds = array<i64: 16, 2>}, {pipeline_mode = #tpu.pipeline_mode<synchronous>, transform_indices = @transform_7, window_bounds = array<i64: 1, 86>}, {transform_indices = @transform_8, window_bounds = array<i64: 8, 22>}]} {
    %c0 = arith.constant 0 : index
    %c0_0 = arith.constant 0 : index
    %0 = vector.load %arg8[%c0, %c0_0] : memref<1x86xf32, #tpu.memory_space<vmem>>, vector<1x86xf32>
    %1 = vector.extract_strided_slice %0 {offsets = [0, 0], sizes = [1, 32], strides = [1, 1]} : vector<1x86xf32> to vector<1x32xf32>
    %2 = vector.extract_strided_slice %0 {offsets = [0, 32], sizes = [1, 4], strides = [1, 1]} : vector<1x86xf32> to vector<1x4xf32>
    %3 = vector.extract_strided_slice %0 {offsets = [0, 36], sizes = [1, 32], strides = [1, 1]} : vector<1x86xf32> to vector<1x32xf32>
    %4 = vector.extract_strided_slice %0 {offsets = [0, 68], sizes = [1, 16], strides = [1, 1]} : vector<1x86xf32> to vector<1x16xf32>
    %5 = vector.extract_strided_slice %0 {offsets = [0, 84], sizes = [1, 2], strides = [1, 1]} : vector<1x86xf32> to vector<1x2xf32>
    %c0_1 = arith.constant 0 : index
    %c0_2 = arith.constant 0 : index
    %6 = vector.load %arg1[%c0_1, %c0_2] : memref<8x38xf32, #tpu.memory_space<vmem>>, vector<8x38xf32>
    %7 = vector.extract_strided_slice %6 {offsets = [0, 16], sizes = [8, 20], strides = [1, 1]} : vector<8x38xf32> to vector<8x20xf32>
    %8 = vector.extract_strided_slice %6 {offsets = [0, 36], sizes = [8, 2], strides = [1, 1]} : vector<8x38xf32> to vector<8x2xf32>
    %c0_3 = arith.constant 0 : index
    %c0_4 = arith.constant 0 : index
    %9 = vector.load %arg2[%c0_3, %c0_4] : memref<38x32xf32, #tpu.memory_space<vmem>>, vector<38x32xf32>
    %cst = arith.constant dense<0.000000e+00> : vector<8x32xf32>
    %10 = tpu.matmul %6, %9, %cst {dimension_numbers = #tpu.dot_dimension_numbers<[1], [0], [0], [1], [0, 0, 1, 1], [], []>} : vector<8x38xf32>, vector<38x32xf32>, vector<8x32xf32> -> vector<8x32xf32>
    %11 = vector.broadcast %1 : vector<1x32xf32> to vector<8x32xf32>
    %12 = arith.addf %10, %11 : vector<8x32xf32>
    %cst_5 = arith.constant 0.000000e+00 : f32
    %13 = vector.broadcast %cst_5 : f32 to vector<8x32xf32>
    %14 = arith.maximumf %12, %13 : vector<8x32xf32>
    %c0_6 = arith.constant 0 : index
    %c0_7 = arith.constant 0 : index
    %15 = vector.load %arg3[%c0_6, %c0_7] : memref<32x4xf32, #tpu.memory_space<vmem>>, vector<32x4xf32>
    %cst_8 = arith.constant dense<0.000000e+00> : vector<8x4xf32>
    %16 = tpu.matmul %14, %15, %cst_8 {dimension_numbers = #tpu.dot_dimension_numbers<[1], [0], [0], [1], [0, 0, 1, 1], [], []>} : vector<8x32xf32>, vector<32x4xf32>, vector<8x4xf32> -> vector<8x4xf32>
    %17 = vector.broadcast %2 : vector<1x4xf32> to vector<8x4xf32>
    %18 = arith.addf %16, %17 : vector<8x4xf32>
    %19 = vector.extract_strided_slice %18 {offsets = [0, 0], sizes = [8, 2], strides = [1, 1]} : vector<8x4xf32> to vector<8x2xf32>
    %20 = vector.extract_strided_slice %18 {offsets = [0, 2], sizes = [8, 2], strides = [1, 1]} : vector<8x4xf32> to vector<8x2xf32>
    %cst_9 = arith.constant 5.000000e-01 : f32
    %21 = vector.broadcast %cst_9 : f32 to vector<8x2xf32>
    %22 = arith.mulf %21, %20 : vector<8x2xf32>
    %23 = math.exp %22 : vector<8x2xf32>
    %24 = arith.mulf %8, %23 : vector<8x2xf32>
    %25 = arith.addf %24, %19 : vector<8x2xf32>
    %c0_10 = arith.constant 0 : index
    %c0_11 = arith.constant 0 : index
    %26 = vector.load %arg4[%c0_10, %c0_11] : memref<2x32xf32, #tpu.memory_space<vmem>>, vector<2x32xf32>
    %cst_12 = arith.constant dense<0.000000e+00> : vector<8x32xf32>
    %27 = tpu.matmul %25, %26, %cst_12 {dimension_numbers = #tpu.dot_dimension_numbers<[1], [0], [0], [1], [0, 0, 1, 1], [], []>} : vector<8x2xf32>, vector<2x32xf32>, vector<8x32xf32> -> vector<8x32xf32>
    %c0_13 = arith.constant 0 : index
    %c0_14 = arith.constant 0 : index
    %28 = vector.load %arg5[%c0_13, %c0_14] : memref<20x32xf32, #tpu.memory_space<vmem>>, vector<20x32xf32>
    %cst_15 = arith.constant dense<0.000000e+00> : vector<8x32xf32>
    %29 = tpu.matmul %7, %28, %cst_15 {dimension_numbers = #tpu.dot_dimension_numbers<[1], [0], [0], [1], [0, 0, 1, 1], [], []>} : vector<8x20xf32>, vector<20x32xf32>, vector<8x32xf32> -> vector<8x32xf32>
    %30 = arith.addf %27, %29 : vector<8x32xf32>
    %31 = vector.broadcast %3 : vector<1x32xf32> to vector<8x32xf32>
    %32 = arith.addf %30, %31 : vector<8x32xf32>
    %cst_16 = arith.constant 0.000000e+00 : f32
    %33 = vector.broadcast %cst_16 : f32 to vector<8x32xf32>
    %34 = arith.maximumf %32, %33 : vector<8x32xf32>
    %c0_17 = arith.constant 0 : index
    %c0_18 = arith.constant 0 : index
    %35 = vector.load %arg6[%c0_17, %c0_18] : memref<32x16xf32, #tpu.memory_space<vmem>>, vector<32x16xf32>
    %cst_19 = arith.constant dense<0.000000e+00> : vector<8x16xf32>
    %36 = tpu.matmul %34, %35, %cst_19 {dimension_numbers = #tpu.dot_dimension_numbers<[1], [0], [0], [1], [0, 0, 1, 1], [], []>} : vector<8x32xf32>, vector<32x16xf32>, vector<8x16xf32> -> vector<8x16xf32>
    %37 = vector.broadcast %4 : vector<1x16xf32> to vector<8x16xf32>
    %38 = arith.addf %36, %37 : vector<8x16xf32>
    %cst_20 = arith.constant 0.000000e+00 : f32
    %39 = vector.broadcast %cst_20 : f32 to vector<8x16xf32>
    %40 = arith.maximumf %38, %39 : vector<8x16xf32>
    %cst_21 = arith.constant 6.28318548 : f32
    %41 = vector.broadcast %cst_21 : f32 to vector<8x16xf32>
    %42 = arith.mulf %41, %40 : vector<8x16xf32>
    %43 = math.sin %42 : vector<8x16xf32>
    %cst_22 = arith.constant 6.28318548 : f32
    %44 = vector.broadcast %cst_22 : f32 to vector<8x16xf32>
    %45 = arith.divf %43, %44 : vector<8x16xf32>
    %46 = arith.subf %40, %45 : vector<8x16xf32>
    %cst_23 = arith.constant 6.28318548 : f32
    %47 = vector.broadcast %cst_23 : f32 to vector<8x16xf32>
    %48 = arith.mulf %47, %46 : vector<8x16xf32>
    %49 = math.sin %48 : vector<8x16xf32>
    %cst_24 = arith.constant 6.28318548 : f32
    %50 = vector.broadcast %cst_24 : f32 to vector<8x16xf32>
    %51 = arith.divf %49, %50 : vector<8x16xf32>
    %52 = arith.subf %46, %51 : vector<8x16xf32>
    %c0_25 = arith.constant 0 : index
    %c0_26 = arith.constant 0 : index
    %53 = vector.load %arg7[%c0_25, %c0_26] : memref<16x2xf32, #tpu.memory_space<vmem>>, vector<16x2xf32>
    %cst_27 = arith.constant dense<0.000000e+00> : vector<8x2xf32>
    %54 = tpu.matmul %52, %53, %cst_27 {dimension_numbers = #tpu.dot_dimension_numbers<[1], [0], [0], [1], [0, 0, 1, 1], [], []>} : vector<8x16xf32>, vector<16x2xf32>, vector<8x2xf32> -> vector<8x2xf32>
    %55 = vector.broadcast %5 : vector<1x2xf32> to vector<8x2xf32>
    %56 = arith.addf %54, %55 : vector<8x2xf32>
    %57 = tpu.iota {dimensions = array<i32: 1>} : vector<8x2xi32>
    %c1_i32 = arith.constant 1 : i32
    %58 = vector.broadcast %c1_i32 : i32 to vector<8x2xi32>
    %59 = arith.cmpi eq, %57, %58 : vector<8x2xi32>
    %cst_28 = arith.constant 0.000000e+00 : f32
    %60 = vector.broadcast %cst_28 : f32 to vector<8x2xf32>
    %61 = arith.maximumf %56, %60 : vector<8x2xf32>
    %62 = arith.select %59, %61, %56 : vector<8x2xi1>, vector<8x2xf32>
    %c0_29 = arith.constant 0 : index
    %c0_30 = arith.constant 0 : index
    %63 = vector.load %arg9[%c0_29, %c0_30] : memref<8x22xf32, #tpu.memory_space<vmem>>, vector<8x16xf32>
    tpu.vector_store %arg9[%c0_29, %c0_30], %52 {strides = array<i32>} : memref<8x22xf32, #tpu.memory_space<vmem>>, vector<8x16xf32>,
    %c0_31 = arith.constant 0 : index
    %c16 = arith.constant 16 : index
    %64 = vector.load %arg9[%c0_31, %c16] : memref<8x22xf32, #tpu.memory_space<vmem>>, vector<8x4xf32>
    tpu.vector_store %arg9[%c0_31, %c16], %18 {strides = array<i32>} : memref<8x22xf32, #tpu.memory_space<vmem>>, vector<8x4xf32>,
    %c0_32 = arith.constant 0 : index
    %c20 = arith.constant 20 : index
    %65 = vector.load %arg9[%c0_32, %c20] : memref<8x22xf32, #tpu.memory_space<vmem>>, vector<8x2xf32>
    tpu.vector_store %arg9[%c0_32, %c20], %62 {strides = array<i32>} : memref<8x22xf32, #tpu.memory_space<vmem>>, vector<8x2xf32>,
    return
  }
  func.func @transform_0(%arg0: i32) -> (i32, i32) {
    %c0_i32 = arith.constant 0 : i32
    %c0_i32_0 = arith.constant 0 : i32
    return %arg0, %c0_i32 : i32, i32
  }
  func.func @transform_1(%arg0: i32) -> (i32, i32) {
    %c0_i32 = arith.constant 0 : i32
    %c0_i32_0 = arith.constant 0 : i32
    %c0_i32_1 = arith.constant 0 : i32
    return %c0_i32, %c0_i32_0 : i32, i32
  }
  func.func @transform_2(%arg0: i32) -> (i32, i32) {
    %c0_i32 = arith.constant 0 : i32
    %c0_i32_0 = arith.constant 0 : i32
    %c0_i32_1 = arith.constant 0 : i32
    return %c0_i32, %c0_i32_0 : i32, i32
  }
  func.func @transform_3(%arg0: i32) -> (i32, i32) {
    %c0_i32 = arith.constant 0 : i32
    %c0_i32_0 = arith.constant 0 : i32
    %c0_i32_1 = arith.constant 0 : i32
    return %c0_i32, %c0_i32_0 : i32, i32
  }
  func.func @transform_4(%arg0: i32) -> (i32, i32) {
    %c0_i32 = arith.constant 0 : i32
    %c0_i32_0 = arith.constant 0 : i32
    %c0_i32_1 = arith.constant 0 : i32
    return %c0_i32, %c0_i32_0 : i32, i32
  }
  func.func @transform_5(%arg0: i32) -> (i32, i32) {
    %c0_i32 = arith.constant 0 : i32
    %c0_i32_0 = arith.constant 0 : i32
    %c0_i32_1 = arith.constant 0 : i32
    return %c0_i32, %c0_i32_0 : i32, i32
  }
  func.func @transform_6(%arg0: i32) -> (i32, i32) {
    %c0_i32 = arith.constant 0 : i32
    %c0_i32_0 = arith.constant 0 : i32
    %c0_i32_1 = arith.constant 0 : i32
    return %c0_i32, %c0_i32_0 : i32, i32
  }
  func.func @transform_7(%arg0: i32) -> (i32, i32) {
    %c0_i32 = arith.constant 0 : i32
    %c0_i32_0 = arith.constant 0 : i32
    %c0_i32_1 = arith.constant 0 : i32
    return %c0_i32, %c0_i32_0 : i32, i32
  }
  func.func @transform_8(%arg0: i32) -> (i32, i32) {
    %c0_i32 = arith.constant 0 : i32
    %c0_i32_0 = arith.constant 0 : i32
    return %arg0, %c0_i32 : i32, i32
  }
}

</mosaic_0001>

<llo_original>
// kernel: tpu_custom_call.1
$region0: #{tpu_custom_call.1}
  #allocation0 [shape = 'u32[]', space=smem, size = 0x4, offset = 0x4, fixed_abs, tag = 'smem constant byte address 0x4 - core index']
  #allocation1 [shape = 'u32[144,128]{1,0:T(1,128)}', space=vmem, size = 0x12000, scoped, tag = 'internal scratch']
  %s0 = inlined_call_operand.vmem [shape: f32[8,38], index: 0, kind: input, shape index: {}]
  %s1 = inlined_call_operand.vmem [shape: f32[38,32], index: 1, kind: input, shape index: {}]
  %s2 = inlined_call_operand.vmem [shape: f32[32,4], index: 2, kind: input, shape index: {}]
  %s3 = inlined_call_operand.vmem [shape: f32[2,32], index: 3, kind: input, shape index: {}]
  %s4 = inlined_call_operand.vmem [shape: f32[20,32], index: 4, kind: input, shape index: {}]
  %s5 = inlined_call_operand.vmem [shape: f32[32,16], index: 5, kind: input, shape index: {}]
  %s6 = inlined_call_operand.vmem [shape: f32[16,2], index: 6, kind: input, shape index: {}]
  %s7 = inlined_call_operand.vmem [shape: f32[1,86], index: 7, kind: input, shape index: {}]
  %s8 = inlined_call_operand.hbm [shape: f32[8,22], index: 8, kind: output, shape index: {}]
  %s9 = sld [smem:[#allocation0]]
  $region42: #{tpu_custom_call.1} parent=0
    _
  %s11 = ssub.s32 1, %s9
  %s12 = scalar_select 0, %s11, %s9
  $region1: #{tpu_custom_call.1} parent=0
    #allocation2 [shape = 'u8[4096]{0}', space=vmem, size = 0x1000, scoped, tag = 'output window, operand 0, single buffered']
    #allocation3 [shape = 's32[1]{0}', space=sflag, size = 0x4, scoped, tag = 'scoped memory for tpu_custom_call.1']
    %13 = vsyncpa [#allocation3], 0
    // Predicated region
    $region2: #{tpu_custom_call.1} parent=1 // pred_check
      _
    $region3: #{tpu_custom_call.1} parent=1 // pred_check_branch
      %15 = sbr.rel (0) target = $region5
    $region4: #{tpu_custom_call.1} parent=1 // pred_region
      _
    $region5: #{tpu_custom_call.1} parent=1 // pred_fallthru
      _
    // Predicated region
    $region6: #{tpu_custom_call.1} parent=1 // pred_check
      _
    $region7: #{tpu_custom_call.1} parent=1 // pred_check_branch
      %17 = sbr.rel (0) target = $region9
    $region8: #{tpu_custom_call.1} parent=1 // pred_region
      _
    $region9: #{tpu_custom_call.1} parent=1 // pred_fallthru
      _
    // Predicated region
    $region10: #{tpu_custom_call.1} parent=1 // pred_check
      _
    $region11: #{tpu_custom_call.1} parent=1 // pred_check_branch
      %19 = sbr.rel (0) target = $region13
    $region12: #{tpu_custom_call.1} parent=1 // pred_region
      _
    $region13: #{tpu_custom_call.1} parent=1 // pred_fallthru
      _
    // Predicated region
    $region14: #{tpu_custom_call.1} parent=1 // pred_check
      _
    $region15: #{tpu_custom_call.1} parent=1 // pred_check_branch
      %21 = sbr.rel (0) target = $region17
    $region16: #{tpu_custom_call.1} parent=1 // pred_region
      _
    $region17: #{tpu_custom_call.1} parent=1 // pred_fallthru
      _
    // Predicated region
    $region18: #{tpu_custom_call.1} parent=1 // pred_check
      _
    $region19: #{tpu_custom_call.1} parent=1 // pred_check_branch
      %23 = sbr.rel (0) target = $region21
    $region20: #{tpu_custom_call.1} parent=1 // pred_region
      _
    $region21: #{tpu_custom_call.1} parent=1 // pred_fallthru
      _
    // Predicated region
    $region22: #{tpu_custom_call.1} parent=1 // pred_check
      _
    $region23: #{tpu_custom_call.1} parent=1 // pred_check_branch
      %25 = sbr.rel (0) target = $region25
    $region24: #{tpu_custom_call.1} parent=1 // pred_region
      _
    $region25: #{tpu_custom_call.1} parent=1 // pred_fallthru
      _
    // Predicated region
    $region26: #{tpu_custom_call.1} parent=1 // pred_check
      _
    $region27: #{tpu_custom_call.1} parent=1 // pred_check_branch
      %27 = sbr.rel (0) target = $region29
    $region28: #{tpu_custom_call.1} parent=1 // pred_region
      _
    $region29: #{tpu_custom_call.1} parent=1 // pred_fallthru
      _
    // Predicated region
    $region30: #{tpu_custom_call.1} parent=1 // pred_check
      _
    $region31: #{tpu_custom_call.1} parent=1 // pred_check_branch
      %29 = sbr.rel (0) target = $region33
    $region32: #{tpu_custom_call.1} parent=1 // pred_region
      _
    $region33: #{tpu_custom_call.1} parent=1 // pred_fallthru
      _
    %v30 = vld [vmem:[%s7] sm:$0x1]
    %v31 = vld [vmem:[%s0] sm:$0xff]
    %v32 = vld [vmem:[%s1] sm:$0xff]
    %v33 = vld [vmem:[%s1 + $0x8] sm:$0xff]
    %v34 = vld [vmem:[%s1 + $0x10] sm:$0xff]
    %v35 = vld [vmem:[%s1 + $0x18] sm:$0xff]
    %v36 = vld [vmem:[%s1 + $0x20] sm:$0x3f]
    %v38 = vlaneseq
    %v39 = vshrl.u32 %v38, 7
    %v40 = vsub.s32 0, %v39
    %v41 = vrot.slane %v30, %v40
    %vm43 = vcmask 310272
    %v45 = vsel %vm43, %v31, 0
    %vm47 = vcmask 1045504
    %v49 = vsel %vm47, %v36, 0
    %51 = vmatprep.subr.mxu0 0.0
    %52 = vmatpush1.msra.mxu0 %v32
    %53 = vmatprep.subr.mxu0 0.0
    %54 = vmatpush1.msra.mxu0 %v33
    %55 = vmatprep.subr.mxu0 0.0
    %56 = vmatpush1.msra.mxu0 %v34
    %57 = vmatprep.subr.mxu0 0.0
    %58 = vmatpush1.msra.mxu0 %v35
    %59 = vmatprep.subr.mxu0 0.0
    %60 = vmatpush1.msra.mxu0 %v49
    %61 = vmatprep.subr.mxu0 0.0
    %62 = vmatpush1.msra.mxu0 0.0
    %63 = vmatprep.subr.mxu0 0.0
    %64 = vmatpush1.msra.mxu0 0.0
    %65 = vmatprep.subr.mxu0 0.0
    %66 = vmatpush1.msra.mxu0 0.0
    %67 = vmatprep.subr.mxu0 0.0
    %68 = vmatpush1.msra.mxu0 0.0
    %69 = vmatprep.subr.mxu0 0.0
    %70 = vmatpush1.msra.mxu0 0.0
    %71 = vmatprep.subr.mxu0 0.0
    %72 = vmatpush1.msra.mxu0 0.0
    %73 = vmatprep.subr.mxu0 0.0
    %74 = vmatpush1.msra.mxu0 0.0
    %75 = vmatprep.subr.mxu0 0.0
    %76 = vmatpush1.msra.mxu0 0.0
    %77 = vmatprep.subr.mxu0 0.0
    %78 = vmatpush1.msra.mxu0 0.0
    %79 = vmatprep.subr.mxu0 0.0
    %80 = vmatpush1.msra.mxu0 0.0
    %81 = vmatprep.subr.mxu0 0.0
    %82 = vmatpush1.msra.mxu0 0.0
    %83 = vmatprep.subr.mxu0 0.0
    %84 = vmatpush1.msra.mxu0 0.0
    %85 = vmatprep.subr.mxu0 0.0
    %86 = vmatpush1.msra.mxu0 0.0
    %87 = vmatprep.subr.mxu0 0.0
    %88 = vmatpush1.msra.mxu0 0.0
    %89 = vmatprep.subr.mxu0 0.0
    %90 = vmatpush1.msra.mxu0 0.0
    %91 = vmatprep.subr.mxu0 0.0
    %92 = vmatpush1.msra.mxu0 0.0
    %93 = vmatprep.subr.mxu0 0.0
    %94 = vmatpush1.msra.mxu0 0.0
    %95 = vmatprep.subr.mxu0 0.0
    %96 = vmatpush1.msra.mxu0 0.0
    %97 = vmatprep.subr.mxu0 0.0
    %98 = vmatpush1.msra.mxu0 0.0
    %99 = vmatprep.subr.mxu0 0.0
    %100 = vmatpush1.msra.mxu0 0.0
    %101 = vmatprep.subr.mxu0 0.0
    %102 = vmatpush1.msra.mxu0 0.0
    %103 = vmatprep.subr.mxu0 0.0
    %104 = vmatpush1.msra.mxu0 0.0
    %105 = vmatprep.subr.mxu0 0.0
    %106 = vmatpush1.msra.mxu0 0.0
    %107 = vmatprep.subr.mxu0 0.0
    %108 = vmatpush1.msra.mxu0 0.0
    %109 = vmatprep.subr.mxu0 0.0
    %110 = vmatpush1.msra.mxu0 0.0
    %111 = vmatprep.subr.mxu0 0.0
    %112 = vmatpush1.msra.mxu0 0.0
    %113 = vmatprep.subr.mxu0 0.0
    %114 = vmatpush1.msra.mxu0 0.0
    %115 = vmatprep.mubr.f32.mxu0 0.0
    %116 = vmatmul.mubr.f32.gmra.mrb[0].mxu0 %v45
    %v117 = vpop.f32.mrb[0].mxu0
    %v118 = vadd.f32 %v41, %v117
    %v119 = vpop.f32.mrb[0].mxu0
    %120 = vdwg.mxu0
    %v121 = vmax.f32 %v118, 0.0
    %v122 = vld [vmem:[%s2] sm:$0xff]
    %v123 = vld [vmem:[%s2 + $0x8] sm:$0xff]
    %v124 = vld [vmem:[%s2 + $0x10] sm:$0xff]
    %v125 = vld [vmem:[%s2 + $0x18] sm:$0xff]
    %126 = vrot.lane.b32.xlu0 %v41, 96
    %v127 = vpop.permute.xlu0 %126
    %vm129 = vcmask 261120
    %v131 = vsel %vm129, %v121, 0
    %133 = vmatprep.subr.mxu0 0.0
    %134 = vmatpush1.msra.mxu0 %v122
    %135 = vmatprep.subr.mxu0 0.0
    %136 = vmatpush1.msra.mxu0 %v123
    %137 = vmatprep.subr.mxu0 0.0
    %138 = vmatpush1.msra.mxu0 %v124
    %139 = vmatprep.subr.mxu0 0.0
    %140 = vmatpush1.msra.mxu0 %v125
    %141 = vmatprep.subr.mxu0 0.0
    %142 = vmatpush1.msra.mxu0 0.0
    %143 = vmatprep.subr.mxu0 0.0
    %144 = vmatpush1.msra.mxu0 0.0
    %145 = vmatprep.subr.mxu0 0.0
    %146 = vmatpush1.msra.mxu0 0.0
    %147 = vmatprep.subr.mxu0 0.0
    %148 = vmatpush1.msra.mxu0 0.0
    %149 = vmatprep.subr.mxu0 0.0
    %150 = vmatpush1.msra.mxu0 0.0
    %151 = vmatprep.subr.mxu0 0.0
    %152 = vmatpush1.msra.mxu0 0.0
    %153 = vmatprep.subr.mxu0 0.0
    %154 = vmatpush1.msra.mxu0 0.0
    %155 = vmatprep.subr.mxu0 0.0
    %156 = vmatpush1.msra.mxu0 0.0
    %157 = vmatprep.subr.mxu0 0.0
    %158 = vmatpush1.msra.mxu0 0.0
    %159 = vmatprep.subr.mxu0 0.0
    %160 = vmatpush1.msra.mxu0 0.0
    %161 = vmatprep.subr.mxu0 0.0
    %162 = vmatpush1.msra.mxu0 0.0
    %163 = vmatprep.subr.mxu0 0.0
    %164 = vmatpush1.msra.mxu0 0.0
    %165 = vmatprep.subr.mxu0 0.0
    %166 = vmatpush1.msra.mxu0 0.0
    %167 = vmatprep.subr.mxu0 0.0
    %168 = vmatpush1.msra.mxu0 0.0
    %169 = vmatprep.subr.mxu0 0.0
    %170 = vmatpush1.msra.mxu0 0.0
    %171 = vmatprep.subr.mxu0 0.0
    %172 = vmatpush1.msra.mxu0 0.0
    %173 = vmatprep.subr.mxu0 0.0
    %174 = vmatpush1.msra.mxu0 0.0
    %175 = vmatprep.subr.mxu0 0.0
    %176 = vmatpush1.msra.mxu0 0.0
    %177 = vmatprep.subr.mxu0 0.0
    %178 = vmatpush1.msra.mxu0 0.0
    %179 = vmatprep.subr.mxu0 0.0
    %180 = vmatpush1.msra.mxu0 0.0
    %181 = vmatprep.subr.mxu0 0.0
    %182 = vmatpush1.msra.mxu0 0.0
    %183 = vmatprep.subr.mxu0 0.0
    %184 = vmatpush1.msra.mxu0 0.0
    %185 = vmatprep.subr.mxu0 0.0
    %186 = vmatpush1.msra.mxu0 0.0
    %187 = vmatprep.subr.mxu0 0.0
    %188 = vmatpush1.msra.mxu0 0.0
    %189 = vmatprep.subr.mxu0 0.0
    %190 = vmatpush1.msra.mxu0 0.0
    %191 = vmatprep.subr.mxu0 0.0
    %192 = vmatpush1.msra.mxu0 0.0
    %193 = vmatprep.subr.mxu0 0.0
    %194 = vmatpush1.msra.mxu0 0.0
    %195 = vmatprep.subr.mxu0 0.0
    %196 = vmatpush1.msra.mxu0 0.0
    %197 = vmatprep.mubr.f32.mxu0 0.0
    %198 = vmatmul.mubr.f32.gmra.mrb[0].mxu0 %v131
    %v199 = vpop.f32.mrb[0].mxu0
    %v200 = vadd.f32 %v127, %v199
    %v201 = vpop.f32.mrb[0].mxu0
    %202 = vdwg.mxu0
    %v203 = vmul.f32 %v200, 0.5
    %v204 = vmul.f32 %v203, 1.442695
    %v205 = vpow.pop %v204
    %207 = vrot.lane.b32.xlu0 %v205, 34
    %v208 = vpop.permute.xlu0 %207
    %v210 = vmul.f32 %v31, %v208
    %212 = vrot.lane.b32.xlu0 %v200, 36
    %v213 = vpop.permute.xlu0 %212
    %v215 = vadd.f32 %v210, %v213
    %v216 = vld [vmem:[%s3] sm:$0x3]
    %v217 = vld [vmem:[%s4] sm:$0xff]
    %v218 = vld [vmem:[%s4 + $0x8] sm:$0xff]
    %v219 = vld [vmem:[%s4 + $0x10] sm:$0xf]
    %220 = vrot.lane.b32.xlu0 %v31, 112
    %v221 = vpop.permute.xlu0 %220
    %vm222 = vcmask 162816
    %v223 = vsel %vm222, %v221, 0
    %vm225 = vcmask 1043456
    %v227 = vsel %vm225, %v219, 0
    %229 = vmatprep.subr.mxu0 0.0
    %230 = vmatpush1.msra.mxu0 %v217
    %231 = vmatprep.subr.mxu0 0.0
    %232 = vmatpush1.msra.mxu0 %v218
    %233 = vmatprep.subr.mxu0 0.0
    %234 = vmatpush1.msra.mxu0 %v227
    %235 = vmatprep.subr.mxu0 0.0
    %236 = vmatpush1.msra.mxu0 0.0
    %237 = vmatprep.subr.mxu0 0.0
    %238 = vmatpush1.msra.mxu0 0.0
    %239 = vmatprep.subr.mxu0 0.0
    %240 = vmatpush1.msra.mxu0 0.0
    %241 = vmatprep.subr.mxu0 0.0
    %242 = vmatpush1.msra.mxu0 0.0
    %243 = vmatprep.subr.mxu0 0.0
    %244 = vmatpush1.msra.mxu0 0.0
    %245 = vmatprep.subr.mxu0 0.0
    %246 = vmatpush1.msra.mxu0 0.0
    %247 = vmatprep.subr.mxu0 0.0
    %248 = vmatpush1.msra.mxu0 0.0
    %249 = vmatprep.subr.mxu0 0.0
    %250 = vmatpush1.msra.mxu0 0.0
    %251 = vmatprep.subr.mxu0 0.0
    %252 = vmatpush1.msra.mxu0 0.0
    %253 = vmatprep.subr.mxu0 0.0
    %254 = vmatpush1.msra.mxu0 0.0
    %255 = vmatprep.subr.mxu0 0.0
    %256 = vmatpush1.msra.mxu0 0.0
    %257 = vmatprep.subr.mxu0 0.0
    %258 = vmatpush1.msra.mxu0 0.0
    %259 = vmatprep.subr.mxu0 0.0
    %260 = vmatpush1.msra.mxu0 0.0
    %261 = vmatprep.subr.mxu0 0.0
    %262 = vmatpush1.msra.mxu0 0.0
    %263 = vmatprep.subr.mxu0 0.0
    %264 = vmatpush1.msra.mxu0 0.0
    %265 = vmatprep.subr.mxu0 0.0
    %266 = vmatpush1.msra.mxu0 0.0
    %267 = vmatprep.subr.mxu0 0.0
    %268 = vmatpush1.msra.mxu0 0.0
    %269 = vmatprep.subr.mxu0 0.0
    %270 = vmatpush1.msra.mxu0 0.0
    %271 = vmatprep.subr.mxu0 0.0
    %272 = vmatpush1.msra.mxu0 0.0
    %273 = vmatprep.subr.mxu0 0.0
    %274 = vmatpush1.msra.mxu0 0.0
    %275 = vmatprep.subr.mxu0 0.0
    %276 = vmatpush1.msra.mxu0 0.0
    %277 = vmatprep.subr.mxu0 0.0
    %278 = vmatpush1.msra.mxu0 0.0
    %279 = vmatprep.subr.mxu0 0.0
    %280 = vmatpush1.msra.mxu0 0.0
    %281 = vmatprep.subr.mxu0 0.0
    %282 = vmatpush1.msra.mxu0 0.0
    %283 = vmatprep.subr.mxu0 0.0
    %284 = vmatpush1.msra.mxu0 0.0
    %285 = vmatprep.subr.mxu0 0.0
    %286 = vmatpush1.msra.mxu0 0.0
    %287 = vmatprep.subr.mxu0 0.0
    %288 = vmatpush1.msra.mxu0 0.0
    %289 = vmatprep.subr.mxu0 0.0
    %290 = vmatpush1.msra.mxu0 0.0
    %291 = vmatprep.subr.mxu0 0.0
    %292 = vmatpush1.msra.mxu0 0.0
    %293 = vmatprep.mubr.f32.mxu0 0.0
    %294 = vmatmul.mubr.f32.gmra.mrb[0].mxu0 %v223
    %v295 = vpop.f32.mrb[0].mxu0
    %v296 = vadd.f32 0.0, %v295
    %v297 = vpop.f32.mrb[0].mxu0
    %298 = vdwg.mxu0
    %300 = vrot.lane.b32.xlu0 %v215, 92
    %v301 = vpop.permute.xlu0 %300
    %vm302 = vcmask 15360
    %v303 = vsel %vm302, %v301, 0
    %vm305 = vcmask 1041408
    %v307 = vsel %vm305, %v216, 0
    %309 = vmatprep.subr.mxu0 0.0
    %310 = vmatpush1.msra.mxu0 %v307
    %311 = vmatprep.subr.mxu0 0.0
    %312 = vmatpush1.msra.mxu0 0.0
    %313 = vmatprep.subr.mxu0 0.0
    %314 = vmatpush1.msra.mxu0 0.0
    %315 = vmatprep.subr.mxu0 0.0
    %316 = vmatpush1.msra.mxu0 0.0
    %317 = vmatprep.subr.mxu0 0.0
    %318 = vmatpush1.msra.mxu0 0.0
    %319 = vmatprep.subr.mxu0 0.0
    %320 = vmatpush1.msra.mxu0 0.0
    %321 = vmatprep.subr.mxu0 0.0
    %322 = vmatpush1.msra.mxu0 0.0
    %323 = vmatprep.subr.mxu0 0.0
    %324 = vmatpush1.msra.mxu0 0.0
    %325 = vmatprep.subr.mxu0 0.0
    %326 = vmatpush1.msra.mxu0 0.0
    %327 = vmatprep.subr.mxu0 0.0
    %328 = vmatpush1.msra.mxu0 0.0
    %329 = vmatprep.subr.mxu0 0.0
    %330 = vmatpush1.msra.mxu0 0.0
    %331 = vmatprep.subr.mxu0 0.0
    %332 = vmatpush1.msra.mxu0 0.0
    %333 = vmatprep.subr.mxu0 0.0
    %334 = vmatpush1.msra.mxu0 0.0
    %335 = vmatprep.subr.mxu0 0.0
    %336 = vmatpush1.msra.mxu0 0.0
    %337 = vmatprep.subr.mxu0 0.0
    %338 = vmatpush1.msra.mxu0 0.0
    %339 = vmatprep.subr.mxu0 0.0
    %340 = vmatpush1.msra.mxu0 0.0
    %341 = vmatprep.subr.mxu0 0.0
    %342 = vmatpush1.msra.mxu0 0.0
    %343 = vmatprep.subr.mxu0 0.0
    %344 = vmatpush1.msra.mxu0 0.0
    %345 = vmatprep.subr.mxu0 0.0
    %346 = vmatpush1.msra.mxu0 0.0
    %347 = vmatprep.subr.mxu0 0.0
    %348 = vmatpush1.msra.mxu0 0.0
    %349 = vmatprep.subr.mxu0 0.0
    %350 = vmatpush1.msra.mxu0 0.0
    %351 = vmatprep.subr.mxu0 0.0
    %352 = vmatpush1.msra.mxu0 0.0
    %353 = vmatprep.subr.mxu0 0.0
    %354 = vmatpush1.msra.mxu0 0.0
    %355 = vmatprep.subr.mxu0 0.0
    %356 = vmatpush1.msra.mxu0 0.0
    %357 = vmatprep.subr.mxu0 0.0
    %358 = vmatpush1.msra.mxu0 0.0
    %359 = vmatprep.subr.mxu0 0.0
    %360 = vmatpush1.msra.mxu0 0.0
    %361 = vmatprep.subr.mxu0 0.0
    %362 = vmatpush1.msra.mxu0 0.0
    %363 = vmatprep.subr.mxu0 0.0
    %364 = vmatpush1.msra.mxu0 0.0
    %365 = vmatprep.subr.mxu0 0.0
    %366 = vmatpush1.msra.mxu0 0.0
    %367 = vmatprep.subr.mxu0 0.0
    %368 = vmatpush1.msra.mxu0 0.0
    %369 = vmatprep.subr.mxu0 0.0
    %370 = vmatpush1.msra.mxu0 0.0
    %371 = vmatprep.subr.mxu0 0.0
    %372 = vmatpush1.msra.mxu0 0.0
    %373 = vmatprep.mubr.f32.mxu0 0.0
    %374 = vmatmul.mubr.f32.gmra.mrb[0].mxu0 %v303
    %v375 = vpop.f32.mrb[0].mxu0
    %v376 = vadd.f32 %v296, %v375
    %v377 = vpop.f32.mrb[0].mxu0
    %378 = vdwg.mxu0
    %379 = vrot.lane.b32.xlu0 %v41, 92
    %v380 = vpop.permute.xlu0 %379
    %v382 = vadd.f32 %v376, %v380
    %v383 = vmax.f32 %v382, 0.0
    %v384 = vld [vmem:[%s5] sm:$0xff]
    %v385 = vld [vmem:[%s5 + $0x8] sm:$0xff]
    %v386 = vld [vmem:[%s5 + $0x10] sm:$0xff]
    %v387 = vld [vmem:[%s5 + $0x18] sm:$0xff]
    %388 = vrot.lane.b32.xlu0 %v41, 60
    %v389 = vpop.permute.xlu0 %388
    %v392 = vsel %vm129, %v383, 0
    %394 = vmatprep.subr.mxu0 0.0
    %395 = vmatpush1.msra.mxu0 %v384
    %396 = vmatprep.subr.mxu0 0.0
    %397 = vmatpush1.msra.mxu0 %v385
    %398 = vmatprep.subr.mxu0 0.0
    %399 = vmatpush1.msra.mxu0 %v386
    %400 = vmatprep.subr.mxu0 0.0
    %401 = vmatpush1.msra.mxu0 %v387
    %402 = vmatprep.subr.mxu0 0.0
    %403 = vmatpush1.msra.mxu0 0.0
    %404 = vmatprep.subr.mxu0 0.0
    %405 = vmatpush1.msra.mxu0 0.0
    %406 = vmatprep.subr.mxu0 0.0
    %407 = vmatpush1.msra.mxu0 0.0
    %408 = vmatprep.subr.mxu0 0.0
    %409 = vmatpush1.msra.mxu0 0.0
    %410 = vmatprep.subr.mxu0 0.0
    %411 = vmatpush1.msra.mxu0 0.0
    %412 = vmatprep.subr.mxu0 0.0
    %413 = vmatpush1.msra.mxu0 0.0
    %414 = vmatprep.subr.mxu0 0.0
    %415 = vmatpush1.msra.mxu0 0.0
    %416 = vmatprep.subr.mxu0 0.0
    %417 = vmatpush1.msra.mxu0 0.0
    %418 = vmatprep.subr.mxu0 0.0
    %419 = vmatpush1.msra.mxu0 0.0
    %420 = vmatprep.subr.mxu0 0.0
    %421 = vmatpush1.msra.mxu0 0.0
    %422 = vmatprep.subr.mxu0 0.0
    %423 = vmatpush1.msra.mxu0 0.0
    %424 = vmatprep.subr.mxu0 0.0
    %425 = vmatpush1.msra.mxu0 0.0
    %426 = vmatprep.subr.mxu0 0.0
    %427 = vmatpush1.msra.mxu0 0.0
    %428 = vmatprep.subr.mxu0 0.0
    %429 = vmatpush1.msra.mxu0 0.0
    %430 = vmatprep.subr.mxu0 0.0
    %431 = vmatpush1.msra.mxu0 0.0
    %432 = vmatprep.subr.mxu0 0.0
    %433 = vmatpush1.msra.mxu0 0.0
    %434 = vmatprep.subr.mxu0 0.0
    %435 = vmatpush1.msra.mxu0 0.0
    %436 = vmatprep.subr.mxu0 0.0
    %437 = vmatpush1.msra.mxu0 0.0
    %438 = vmatprep.subr.mxu0 0.0
    %439 = vmatpush1.msra.mxu0 0.0
    %440 = vmatprep.subr.mxu0 0.0
    %441 = vmatpush1.msra.mxu0 0.0
    %442 = vmatprep.subr.mxu0 0.0
    %443 = vmatpush1.msra.mxu0 0.0
    %444 = vmatprep.subr.mxu0 0.0
    %445 = vmatpush1.msra.mxu0 0.0
    %446 = vmatprep.subr.mxu0 0.0
    %447 = vmatpush1.msra.mxu0 0.0
    %448 = vmatprep.subr.mxu0 0.0
    %449 = vmatpush1.msra.mxu0 0.0
    %450 = vmatprep.subr.mxu0 0.0
    %451 = vmatpush1.msra.mxu0 0.0
    %452 = vmatprep.subr.mxu0 0.0
    %453 = vmatpush1.msra.mxu0 0.0
    %454 = vmatprep.subr.mxu0 0.0
    %455 = vmatpush1.msra.mxu0 0.0
    %456 = vmatprep.subr.mxu0 0.0
    %457 = vmatpush1.msra.mxu0 0.0
    %458 = vmatprep.mubr.f32.mxu0 0.0
    %459 = vmatmul.mubr.f32.gmra.mrb[0].mxu0 %v392
    %v460 = vpop.f32.mrb[0].mxu0
    %v461 = vadd.f32 %v389, %v460
    %v462 = vpop.f32.mrb[0].mxu0
    %463 = vdwg.mxu0
    %v464 = vmax.f32 %v461, 0.0
    %v465 = vmul.f32 %v464, 6.2831855
    %v466 = vand.u32 2147483647, %v465
    %vm467 = vcmp.le.f32.partialorder %v466, 0.7853982
    %vm468 = vcmp.lt.s32.totalorder %v465, 0
    %v469 = vand.u32 %v465, 2139095040
    %v470 = vshrl.u32 %v469, 23
    %v471 = vsub.s32 %v470, 127
    %v472 = vand.u32 2147483647, %v465
    %v473 = vand.u32 %v472, 8388607
    %v474 = vor.u32 %v473, 8388608
    %v475 = vsub.s32 0, %v474
    %v476 = vadd.s32 %v471, 1
    %vm477 = vcmp.gt.s32.totalorder %v476, 0
    %v478 = vsel %vm477, %v476, 0
    %v479 = vshrl.u32 %v478, 5
    %v480 = vand.u32 %v478, 31
    %v481 = vsub.s32 32, %v480
    %v482 = vshrl.u32 683565275, %v481
    %v483 = vshll.u32 683565275, %v480
    %v484 = vshrl.u32 2475754826, %v481
    %v485 = vor.u32 %v483, %v484
    %v486 = vshll.u32 2475754826, %v480
    %v487 = vshrl.u32 2131351028, %v481
    %v488 = vor.u32 %v486, %v487
    %v489 = vshll.u32 2131351028, %v480
    %v490 = vshrl.u32 2102212464, %v481
    %v491 = vor.u32 %v489, %v490
    %v492 = vshll.u32 2102212464, %v480
    %v493 = vshrl.u32 920167782, %v481
    %v494 = vor.u32 %v492, %v493
    %v495 = vshll.u32 920167782, %v480
    %v496 = vshrl.u32 1326507024, %v481
    %v497 = vor.u32 %v495, %v496
    %vm498 = vcmp.lt.s32.totalorder %v479, 1
    %vm499 = vcmp.lt.s32.totalorder %v479, 2
    %vm500 = vcmp.lt.s32.totalorder %v479, 3
    %vm501 = vcmp.lt.s32.totalorder %v479, 4
    %v502 = vsel %vm498, %v482, %v485
    %v503 = vsel %vm501, %v491, 2102212464
    %v504 = vsel %vm500, %v488, %v503
    %v505 = vsel %vm499, %v502, %v504
    %v506 = vsel %vm498, %v485, %v488
    %v507 = vsel %vm501, %v494, 920167782
    %v508 = vsel %vm500, %v491, %v507
    %v509 = vsel %vm499, %v506, %v508
    %v510 = vsel %vm498, %v488, %v491
    %v511 = vsel %vm501, %v497, 1326507024
    %v512 = vsel %vm500, %v494, %v511
    %v513 = vsel %vm499, %v510, %v512
    %v514 = vshll.u32 %v474, 8
    %v515 = vmul.u32.u64.compose %v514, %v513
    %v516 = vextract.low.u32 %v515
    %v517 = vextract.high.u32 %v515
    %v518 = vmul.u32.u64.compose %v514, %v509
    %v519 = vextract.low.u32 %v518
    %v520 = vextract.high.u32 %v518
    %v521 = vmul.u32 %v514, %v505
    %v522 = vadd.s32 %v517, %v519
    %vm523 = vc.u32 %v517, %v519
    %v524 = vadd.s32 %v520, 1
    %v525 = vsel %vm523, %v524, %v520
    %v526 = vadd.s32 %v521, %v525
    %v527 = vadd.s32 %v526, 536870912
    %v528 = vshrl.u32 %v527, 30
    %v529 = vshll.u32 %v528, 30
    %v530 = vsub.s32 %v526, %v529
    %vm531 = vcmp.lt.s32.totalorder %v530, 0
    %v532 = vsub.s32 0, %v530
    %v533 = vsel %vm531, %v532, %v530
    %v534 = vclz %v533
    %v535 = vsub.s32 %v534, 2
    %vm536 = vcmp.gt.s32.totalorder 0, %v535
    %v537 = vsel %vm536, 0, %v535
    %v538 = vsub.s32 32, %v537
    %v539 = vshll.u32 %v530, %v537
    %v540 = vshrl.u32 %v522, %v538
    %v541 = vor.u32 %v539, %v540
    %v542 = vsub.s32 4294967266, %v537
    %v543 = vadd.s32 %v542, 127
    %v544 = vshll.u32 %v543, 23
    %v545 = vor.u32 4788187, %v544
    %v546 = vand.u32 2147483647, %v545
    %v548 = vcvt.s32.f32 %v541
    %v549 = vmul.f32 %v548, %v546
    %v550 = vxor.u32 %v549, 2147483648
    %v551 = vsel %vm468, %v550, %v549
    %v552 = vsub.s32 4, %v528
    %v553 = vsel %vm468, %v552, %v528
    %v554 = vsel %vm467, %v465, %v551
    %v555 = vsel %vm467, 0, %v553
    %v556 = vcosq.f32.pop %v554
    %v557 = vsinq.f32.pop %v554
    %vm558 = vweird.f32 %v465
    %v559 = vadd.s32 %v555, 3
    %v560 = vand.u32 %v559, 3
    %vm561 = vcmp.lt.s32.totalorder %v560, 2
    %vm562 = vcmp.eq.s32.totalorder %v560, 0
    %v563 = vxor.u32 %v557, 2147483648
    %v564 = vsel %vm562, %v556, %v563
    %vm565 = vcmp.eq.s32.totalorder %v560, 2
    %v566 = vxor.u32 %v556, 2147483648
    %v567 = vsel %vm565, %v566, %v557
    %v568 = vsel %vm561, %v564, %v567
    %v569 = vsel %vm558, nan, %v568
    %v570 = vrcp.pop 6.2831855
    %v571 = vmul.f32 %v569, %v570
    %v572 = vsub.f32 %v464, %v571
    %v573 = vmul.f32 %v572, 6.2831855
    %v574 = vand.u32 2147483647, %v573
    %vm575 = vcmp.le.f32.partialorder %v574, 0.7853982
    %vm576 = vcmp.lt.s32.totalorder %v573, 0
    %v577 = vand.u32 %v573, 2139095040
    %v578 = vshrl.u32 %v577, 23
    %v579 = vsub.s32 %v578, 127
    %v580 = vand.u32 2147483647, %v573
    %v581 = vand.u32 %v580, 8388607
    %v582 = vor.u32 %v581, 8388608
    %v583 = vsub.s32 0, %v582
    %v584 = vadd.s32 %v579, 1
    %vm585 = vcmp.gt.s32.totalorder %v584, 0
    %v586 = vsel %vm585, %v584, 0
    %v587 = vshrl.u32 %v586, 5
    %v588 = vand.u32 %v586, 31
    %v589 = vsub.s32 32, %v588
    %v590 = vshrl.u32 683565275, %v589
    %v591 = vshll.u32 683565275, %v588
    %v592 = vshrl.u32 2475754826, %v589
    %v593 = vor.u32 %v591, %v592
    %v594 = vshll.u32 2475754826, %v588
    %v595 = vshrl.u32 2131351028, %v589
    %v596 = vor.u32 %v594, %v595
    %v597 = vshll.u32 2131351028, %v588
    %v598 = vshrl.u32 2102212464, %v589
    %v599 = vor.u32 %v597, %v598
    %v600 = vshll.u32 2102212464, %v588
    %v601 = vshrl.u32 920167782, %v589
    %v602 = vor.u32 %v600, %v601
    %v603 = vshll.u32 920167782, %v588
    %v604 = vshrl.u32 1326507024, %v589
    %v605 = vor.u32 %v603, %v604
    %vm606 = vcmp.lt.s32.totalorder %v587, 1
    %vm607 = vcmp.lt.s32.totalorder %v587, 2
    %vm608 = vcmp.lt.s32.totalorder %v587, 3
    %vm609 = vcmp.lt.s32.totalorder %v587, 4
    %v610 = vsel %vm606, %v590, %v593
    %v611 = vsel %vm609, %v599, 2102212464
    %v612 = vsel %vm608, %v596, %v611
    %v613 = vsel %vm607, %v610, %v612
    %v614 = vsel %vm606, %v593, %v596
    %v615 = vsel %vm609, %v602, 920167782
    %v616 = vsel %vm608, %v599, %v615
    %v617 = vsel %vm607, %v614, %v616
    %v618 = vsel %vm606, %v596, %v599
    %v619 = vsel %vm609, %v605, 1326507024
    %v620 = vsel %vm608, %v602, %v619
    %v621 = vsel %vm607, %v618, %v620
    %v622 = vshll.u32 %v582, 8
    %v623 = vmul.u32.u64.compose %v622, %v621
    %v624 = vextract.low.u32 %v623
    %v625 = vextract.high.u32 %v623
    %v626 = vmul.u32.u64.compose %v622, %v617
    %v627 = vextract.low.u32 %v626
    %v628 = vextract.high.u32 %v626
    %v629 = vmul.u32 %v622, %v613
    %v630 = vadd.s32 %v625, %v627
    %vm631 = vc.u32 %v625, %v627
    %v632 = vadd.s32 %v628, 1
    %v633 = vsel %vm631, %v632, %v628
    %v634 = vadd.s32 %v629, %v633
    %v635 = vadd.s32 %v634, 536870912
    %v636 = vshrl.u32 %v635, 30
    %v637 = vshll.u32 %v636, 30
    %v638 = vsub.s32 %v634, %v637
    %vm639 = vcmp.lt.s32.totalorder %v638, 0
    %v640 = vsub.s32 0, %v638
    %v641 = vsel %vm639, %v640, %v638
    %v642 = vclz %v641
    %v643 = vsub.s32 %v642, 2
    %vm644 = vcmp.gt.s32.totalorder 0, %v643
    %v645 = vsel %vm644, 0, %v643
    %v646 = vsub.s32 32, %v645
    %v647 = vshll.u32 %v638, %v645
    %v648 = vshrl.u32 %v630, %v646
    %v649 = vor.u32 %v647, %v648
    %v650 = vsub.s32 4294967266, %v645
    %v651 = vadd.s32 %v650, 127
    %v652 = vshll.u32 %v651, 23
    %v653 = vor.u32 4788187, %v652
    %v654 = vand.u32 2147483647, %v653
    %v656 = vcvt.s32.f32 %v649
    %v657 = vmul.f32 %v656, %v654
    %v658 = vxor.u32 %v657, 2147483648
    %v659 = vsel %vm576, %v658, %v657
    %v660 = vsub.s32 4, %v636
    %v661 = vsel %vm576, %v660, %v636
    %v662 = vsel %vm575, %v573, %v659
    %v663 = vsel %vm575, 0, %v661
    %v664 = vcosq.f32.pop %v662
    %v665 = vsinq.f32.pop %v662
    %vm666 = vweird.f32 %v573
    %v667 = vadd.s32 %v663, 3
    %v668 = vand.u32 %v667, 3
    %vm669 = vcmp.lt.s32.totalorder %v668, 2
    %vm670 = vcmp.eq.s32.totalorder %v668, 0
    %v671 = vxor.u32 %v665, 2147483648
    %v672 = vsel %vm670, %v664, %v671
    %vm673 = vcmp.eq.s32.totalorder %v668, 2
    %v674 = vxor.u32 %v664, 2147483648
    %v675 = vsel %vm673, %v674, %v665
    %v676 = vsel %vm669, %v672, %v675
    %v677 = vsel %vm666, nan, %v676
    %v678 = vmul.f32 %v677, %v570
    %v679 = vsub.f32 %v572, %v678
    %v680 = vld [vmem:[%s6] sm:$0xff]
    %v681 = vld [vmem:[%s6 + $0x8] sm:$0xff]
    %682 = vrot.lane.b32.xlu0 %v41, 44
    %v683 = vpop.permute.xlu0 %682
    %vm685 = vcmask 130048
    %v687 = vsel %vm685, %v679, 0
    %689 = vmatprep.subr.mxu0 0.0
    %690 = vmatpush1.msra.mxu0 %v680
    %691 = vmatprep.subr.mxu0 0.0
    %692 = vmatpush1.msra.mxu0 %v681
    %693 = vmatprep.subr.mxu0 0.0
    %694 = vmatpush1.msra.mxu0 0.0
    %695 = vmatprep.subr.mxu0 0.0
    %696 = vmatpush1.msra.mxu0 0.0
    %697 = vmatprep.subr.mxu0 0.0
    %698 = vmatpush1.msra.mxu0 0.0
    %699 = vmatprep.subr.mxu0 0.0
    %700 = vmatpush1.msra.mxu0 0.0
    %701 = vmatprep.subr.mxu0 0.0
    %702 = vmatpush1.msra.mxu0 0.0
    %703 = vmatprep.subr.mxu0 0.0
    %704 = vmatpush1.msra.mxu0 0.0
    %705 = vmatprep.subr.mxu0 0.0
    %706 = vmatpush1.msra.mxu0 0.0
    %707 = vmatprep.subr.mxu0 0.0
    %708 = vmatpush1.msra.mxu0 0.0
    %709 = vmatprep.subr.mxu0 0.0
    %710 = vmatpush1.msra.mxu0 0.0
    %711 = vmatprep.subr.mxu0 0.0
    %712 = vmatpush1.msra.mxu0 0.0
    %713 = vmatprep.subr.mxu0 0.0
    %714 = vmatpush1.msra.mxu0 0.0
    %715 = vmatprep.subr.mxu0 0.0
    %716 = vmatpush1.msra.mxu0 0.0
    %717 = vmatprep.subr.mxu0 0.0
    %718 = vmatpush1.msra.mxu0 0.0
    %719 = vmatprep.subr.mxu0 0.0
    %720 = vmatpush1.msra.mxu0 0.0
    %721 = vmatprep.subr.mxu0 0.0
    %722 = vmatpush1.msra.mxu0 0.0
    %723 = vmatprep.subr.mxu0 0.0
    %724 = vmatpush1.msra.mxu0 0.0
    %725 = vmatprep.subr.mxu0 0.0
    %726 = vmatpush1.msra.mxu0 0.0
    %727 = vmatprep.subr.mxu0 0.0
    %728 = vmatpush1.msra.mxu0 0.0
    %729 = vmatprep.subr.mxu0 0.0
    %730 = vmatpush1.msra.mxu0 0.0
    %731 = vmatprep.subr.mxu0 0.0
    %732 = vmatpush1.msra.mxu0 0.0
    %733 = vmatprep.subr.mxu0 0.0
    %734 = vmatpush1.msra.mxu0 0.0
    %735 = vmatprep.subr.mxu0 0.0
    %736 = vmatpush1.msra.mxu0 0.0
    %737 = vmatprep.subr.mxu0 0.0
    %738 = vmatpush1.msra.mxu0 0.0
    %739 = vmatprep.subr.mxu0 0.0
    %740 = vmatpush1.msra.mxu0 0.0
    %741 = vmatprep.subr.mxu0 0.0
    %742 = vmatpush1.msra.mxu0 0.0
    %743 = vmatprep.subr.mxu0 0.0
    %744 = vmatpush1.msra.mxu0 0.0
    %745 = vmatprep.subr.mxu0 0.0
    %746 = vmatpush1.msra.mxu0 0.0
    %747 = vmatprep.subr.mxu0 0.0
    %748 = vmatpush1.msra.mxu0 0.0
    %749 = vmatprep.subr.mxu0 0.0
    %750 = vmatpush1.msra.mxu0 0.0
    %751 = vmatprep.subr.mxu0 0.0
    %752 = vmatpush1.msra.mxu0 0.0
    %753 = vmatprep.mubr.f32.mxu0 0.0
    %754 = vmatmul.mubr.f32.gmra.mrb[0].mxu0 %v687
    %v755 = vpop.f32.mrb[0].mxu0
    %v756 = vadd.f32 %v683, %v755
    %v757 = vpop.f32.mrb[0].mxu0
    %758 = vdwg.mxu0
    %v759 = vlaneseq
    %v760 = vand.u32 %v759, 127
    %vm761 = vcmp.eq.s32.totalorder %v760, 1
    %v762 = vmax.f32 %v756, 0.0
    %v763 = vsel %vm761, %v762, %v756
    %764 = vst.msk [vmem:[#allocation2] sm:$0xff] %vm685, %v679
    %765 = vrot.lane.b32.xlu0 %v200, 16
    %v766 = vpop.permute.xlu0 %765
    %vm768 = vcmask 162944
    %769 = vst.msk [vmem:[#allocation2] sm:$0xff] %vm768, %v766
    %771 = vrot.lane.b32.xlu0 %v763, 20
    %v772 = vpop.permute.xlu0 %771
    %vm774 = vcmask 179360
    %775 = vst.msk [vmem:[#allocation2] sm:$0xff] %vm774, %v772
    // Predicated region
    $region34: #{tpu_custom_call.1} parent=1 // pred_check
      _
    $region35: #{tpu_custom_call.1} parent=1 // pred_check_branch
      %777 = sbr.rel (0) target = $region37
    $region36: #{tpu_custom_call.1} parent=1 // pred_region
      %s779 = ssub.s32 128, 128
      %780 = vsyncadd [#allocation3], %s779
      %s782 = sshll.u32 [#allocation2], 4
      %s783 = int_to_ptr.vmem [resolvable:$true] %s782
      %785 = dma.vmem_to_hbm [thread:$0]  %s783, 128, %s8, [#allocation3]
    $region37: #{tpu_custom_call.1} parent=1 // pred_fallthru
      _
    // Predicated region
    $region38: #{tpu_custom_call.1} parent=1 // pred_check
      _
    $region39: #{tpu_custom_call.1} parent=1 // pred_check_branch
      %787 = sbr.rel (0) target = $region41
    $region40: #{tpu_custom_call.1} parent=1 // pred_region
      %788 = dma.done [#allocation3], 128
    $region41: #{tpu_custom_call.1} parent=1 // pred_fallthru
      _
    %789 = vsyncpa [#allocation3], 1

</llo_original>
